<compile_context>
chip_gen: v5e
topology: v5e:2x2
jax: 0.10.0
libtpu: 0.0.40
codegen_flags: <defaults>
</compile_context>

<pallas_src>
import jax
import jax.numpy as jnp
from jax import lax
from jax.experimental import pallas as pl
from jax.experimental.pallas import tpu as pltpu


def _loss_kernel(p_hat_ref, v_hat_ref, p_ref, v_ref, out_ref):
    b = pl.program_id(0)

    # ---- policy-loss partial for this batch block (rank-1 decomposition) ----
    logp = jnp.log(p_hat_ref[...].astype(jnp.float32))          # (Bt, K, N)
    row_log = jnp.sum(logp, axis=2)                              # (Bt, K)  lane reduce
    col_p = jnp.sum(p_ref[...].astype(jnp.float32), axis=1)      # (Bt, K)  sublane reduce
    ppart = jnp.sum(col_p * row_log)                             # scalar

    # Lane-dense (8,128) partial block: scalar in [0,0], zeros elsewhere.
    row = lax.broadcasted_iota(jnp.int32, out_ref.shape, 0)
    col = lax.broadcasted_iota(jnp.int32, out_ref.shape, 1)
    is00 = (row == 0) & (col == 0)

    @pl.when(b == 0)
    def _():
        # Value loss computed once from the resident dense (B, D) slabs.
        diff = v_hat_ref[...].astype(jnp.float32) - v_ref[...].astype(jnp.float32)
        vloss = jnp.sum(diff * diff)
        out_ref[...] = jnp.where(is00, vloss - ppart, 0.0)

    @pl.when(b != 0)
    def _():
        out_ref[...] = jnp.where(is00, -ppart, 0.0)


def policy_value_loss(p_hat, v_hat, p, v, *, block_batch=None, interpret=False):
    """Pallas implementation of PolicyValueLoss.forward. Returns a scalar f32."""
    B, K, N = p_hat.shape
    Bp, M, K2 = p.shape
    assert Bp == B and K2 == K
    assert v_hat.shape == v.shape and v_hat.shape[0] == B
    D = v_hat.shape[1]

    # ---- per-generation VMEM budget (v5e/v6e: 128 MiB, v7x: 64 MiB per TC) ----
    try:
        vmem_cap = int(pltpu.get_tpu_info().vmem_capacity_bytes)
    except Exception:  # pragma: no cover - conservative fallback
        vmem_cap = 64 * 1024 * 1024
    vmem_limit = max((vmem_cap * 3) // 4, 16 * 1024 * 1024)

    # ---- choose how many batches to process per grid step ----
    bpe_in = max(jnp.dtype(p_hat.dtype).itemsize, jnp.dtype(p.dtype).itemsize)
    # double-buffered input tiles + f32 log intermediate + small reductions
    per_batch = 2 * (K * N + M * K) * bpe_in + (K * N + 2 * K) * 4
    resident = 2 * 2 * B * D * jnp.dtype(v_hat.dtype).itemsize   # v_hat, v
    budget = max(vmem_limit // 2 - resident, per_batch)
    if block_batch is None:
        bt = int(max(1, min(B, budget // per_batch)))
        while B % bt:            # exact blocks only: never feed padded rows to log()
            bt -= 1
    else:
        bt = int(block_batch)
        assert B % bt == 0, "block_batch must divide B"
    num_blocks = B // bt

    partials = pl.pallas_call(
        _loss_kernel,
        out_shape=jax.ShapeDtypeStruct((8 * num_blocks, 128), jnp.float32),
        grid_spec=pltpu.PrefetchScalarGridSpec(
            num_scalar_prefetch=0,
            grid=(num_blocks,),
            in_specs=[
                pl.BlockSpec((bt, K, N), lambda b: (b, 0, 0)),   # p_hat
                pl.BlockSpec((B, D), lambda b: (0, 0)),          # v_hat (resident)
                pl.BlockSpec((bt, M, K), lambda b: (b, 0, 0)),   # p
                pl.BlockSpec((B, D), lambda b: (0, 0)),          # v (resident)
            ],
            out_specs=pl.BlockSpec((8, 128), lambda b: (b, 0)),
        ),
        compiler_params=pltpu.CompilerParams(
            dimension_semantics=("parallel",),   # independent partials -> dual-TC on v7x
            vmem_limit_bytes=int(vmem_limit),
        ),
        interpret=interpret,
    )(p_hat, v_hat, p, v)

    # Final scalar reduction (only one non-zero element per (8,128) block).
    return jnp.sum(partials)


def _reference(p_hat, v_hat, p, v):
    value_loss = jnp.sum((v_hat - v) ** 2)
    policy_loss = -jnp.sum(jnp.einsum("bmk,bkn->bmn", p, jnp.log(p_hat)))
    return value_loss + policy_loss


if __name__ == "__main__":
    key = jax.random.PRNGKey(0)
    k1, k2, k3, k4 = jax.random.split(key, 4)

    B, M, K, N, D = 2, 8, 16, 8, 8
    # p_hat must be strictly positive (it goes through log), as in the torch spec.
    p_hat = jax.random.uniform(k1, (B, K, N), jnp.float32, minval=0.05, maxval=1.0)
    p = jax.random.uniform(k2, (B, M, K), jnp.float32, minval=0.0, maxval=1.0)
    v_hat = jax.random.normal(k3, (B, D), jnp.float32)
    v = jax.random.normal(k4, (B, D), jnp.float32)

    loss = jax.block_until_ready(policy_value_loss(p_hat, v_hat, p, v))
    ref = jax.block_until_ready(_reference(p_hat, v_hat, p, v))

    assert jnp.allclose(loss, ref, rtol=1e-5, atol=1e-4), (loss, ref)
    print("KERNEL_OK")
</pallas_src>

<mosaic_0001>
module attributes {stable_mosaic.version = 11 : i64} {
  func.func @_loss_kernel(%arg0: i32, %arg1: memref<2x16x8xf32, #tpu.memory_space<vmem>>, %arg2: memref<2x8xf32, #tpu.memory_space<vmem>>, %arg3: memref<2x8x16xf32, #tpu.memory_space<vmem>>, %arg4: memref<2x8xf32, #tpu.memory_space<vmem>>, %arg5: memref<8x128xf32, #tpu.memory_space<vmem>>) attributes {dimension_semantics = [#tpu.dimension_semantics<parallel>], iteration_bounds = array<i64: 1>, scalar_prefetch = 0 : i64, scratch_operands = 0 : i64, tpu.core_type = #tpu.core_type<tc>, window_params = [{transform_indices = @transform_0, window_bounds = array<i64: 2, 16, 8>}, {pipeline_mode = #tpu.pipeline_mode<synchronous>, transform_indices = @transform_1, window_bounds = array<i64: 2, 8>}, {transform_indices = @transform_2, window_bounds = array<i64: 2, 8, 16>}, {pipeline_mode = #tpu.pipeline_mode<synchronous>, transform_indices = @transform_3, window_bounds = array<i64: 2, 8>}, {transform_indices = @transform_4, window_bounds = array<i64: 8, 128>}]} {
    %c0 = arith.constant 0 : index
    %c0_0 = arith.constant 0 : index
    %c0_1 = arith.constant 0 : index
    %0 = vector.load %arg1[%c0, %c0_0, %c0_1] : memref<2x16x8xf32, #tpu.memory_space<vmem>>, vector<2x16x8xf32>
    %1 = math.log %0 : vector<2x16x8xf32>
    %cst = arith.constant dense<0.000000e+00> : vector<2x16xf32>
    %2 = vector.multi_reduction <add>, %1, %cst [2] : vector<2x16x8xf32> to vector<2x16xf32>
    %c0_2 = arith.constant 0 : index
    %c0_3 = arith.constant 0 : index
    %c0_4 = arith.constant 0 : index
    %3 = vector.load %arg3[%c0_2, %c0_3, %c0_4] : memref<2x8x16xf32, #tpu.memory_space<vmem>>, vector<2x8x16xf32>
    %cst_5 = arith.constant dense<0.000000e+00> : vector<2x16xf32>
    %4 = vector.multi_reduction <add>, %3, %cst_5 [1] : vector<2x8x16xf32> to vector<2x16xf32>
    %5 = arith.mulf %4, %2 : vector<2x16xf32>
    %6 = vector.shape_cast %5 : vector<2x16xf32> to vector<1x2x16xf32>
    %cst_6 = arith.constant dense<0.000000e+00> : vector<1xf32>
    %7 = vector.multi_reduction <add>, %6, %cst_6 [1, 2] : vector<1x2x16xf32> to vector<1xf32>
    %8 = vector.shape_cast %7 : vector<1xf32> to vector<1x1x1xf32>
    %9 = vector.extract %8[0, 0, 0] : f32 from vector<1x1x1xf32>
    %10 = tpu.iota {dimensions = array<i32: 0>} : vector<8x128xi32>
    %11 = tpu.iota {dimensions = array<i32: 1>} : vector<8x128xi32>
    %c0_i32 = arith.constant 0 : i32
    %12 = vector.broadcast %c0_i32 : i32 to vector<8x128xi32>
    %13 = arith.cmpi eq, %10, %12 : vector<8x128xi32>
    %c0_i32_7 = arith.constant 0 : i32
    %14 = vector.broadcast %c0_i32_7 : i32 to vector<8x128xi32>
    %15 = arith.cmpi eq, %11, %14 : vector<8x128xi32>
    %16 = arith.andi %13, %15 : vector<8x128xi1>
    %c0_i32_8 = arith.constant 0 : i32
    %17 = arith.cmpi eq, %arg0, %c0_i32_8 : i32
    %18 = arith.extui %17 : i1 to i32
    %c0_i32_9 = arith.constant 0 : i32
    %19 = arith.cmpi ne, %18, %c0_i32_9 : i32
    scf.if %19 {
      %c0_12 = arith.constant 0 : index
      %c0_13 = arith.constant 0 : index
      %23 = vector.load %arg2[%c0_12, %c0_13] : memref<2x8xf32, #tpu.memory_space<vmem>>, vector<2x8xf32>
      %c0_14 = arith.constant 0 : index
      %c0_15 = arith.constant 0 : index
      %24 = vector.load %arg4[%c0_14, %c0_15] : memref<2x8xf32, #tpu.memory_space<vmem>>, vector<2x8xf32>
      %25 = arith.subf %23, %24 : vector<2x8xf32>
      %26 = arith.mulf %25, %25 : vector<2x8xf32>
      %27 = vector.shape_cast %26 : vector<2x8xf32> to vector<1x2x8xf32>
      %cst_16 = arith.constant dense<0.000000e+00> : vector<1xf32>
      %28 = vector.multi_reduction <add>, %27, %cst_16 [1, 2] : vector<1x2x8xf32> to vector<1xf32>
      %29 = vector.shape_cast %28 : vector<1xf32> to vector<1x1x1xf32>
      %30 = vector.extract %29[0, 0, 0] : f32 from vector<1x1x1xf32>
      %31 = arith.subf %30, %9 : f32
      %cst_17 = arith.constant 0.000000e+00 : f32
      %32 = vector.broadcast %31 : f32 to vector<8x128xf32>
      %33 = vector.broadcast %cst_17 : f32 to vector<8x128xf32>
      %34 = arith.select %16, %32, %33 : vector<8x128xi1>, vector<8x128xf32>
      %c0_18 = arith.constant 0 : index
      %c0_19 = arith.constant 0 : index
      %35 = vector.load %arg5[%c0_18, %c0_19] : memref<8x128xf32, #tpu.memory_space<vmem>>, vector<8x128xf32>
      tpu.vector_store %arg5[%c0_18, %c0_19], %34 {strides = array<i32>} : memref<8x128xf32, #tpu.memory_space<vmem>>, vector<8x128xf32>,
    } else {
    }
    %c0_i32_10 = arith.constant 0 : i32
    %20 = arith.cmpi ne, %arg0, %c0_i32_10 : i32
    %21 = arith.extui %20 : i1 to i32
    %c0_i32_11 = arith.constant 0 : i32
    %22 = arith.cmpi ne, %21, %c0_i32_11 : i32
    scf.if %22 {
      %cst_12 = arith.constant 0.000000e+00 : f32
      %23 = arith.subf %cst_12, %9 : f32
      %cst_13 = arith.constant 0.000000e+00 : f32
      %24 = vector.broadcast %23 : f32 to vector<8x128xf32>
      %25 = vector.broadcast %cst_13 : f32 to vector<8x128xf32>
      %26 = arith.select %16, %24, %25 : vector<8x128xi1>, vector<8x128xf32>
      %c0_14 = arith.constant 0 : index
      %c0_15 = arith.constant 0 : index
      %27 = vector.load %arg5[%c0_14, %c0_15] : memref<8x128xf32, #tpu.memory_space<vmem>>, vector<8x128xf32>
      tpu.vector_store %arg5[%c0_14, %c0_15], %26 {strides = array<i32>} : memref<8x128xf32, #tpu.memory_space<vmem>>, vector<8x128xf32>,
    } else {
    }
    return
  }
  func.func @transform_0(%arg0: i32) -> (i32, i32, i32) {
    %c0_i32 = arith.constant 0 : i32
    %c0_i32_0 = arith.constant 0 : i32
    %c0_i32_1 = arith.constant 0 : i32
    return %arg0, %c0_i32, %c0_i32_0 : i32, i32, i32
  }
  func.func @transform_1(%arg0: i32) -> (i32, i32) {
    %c0_i32 = arith.constant 0 : i32
    %c0_i32_0 = arith.constant 0 : i32
    %c0_i32_1 = arith.constant 0 : i32
    return %c0_i32, %c0_i32_0 : i32, i32
  }
  func.func @transform_2(%arg0: i32) -> (i32, i32, i32) {
    %c0_i32 = arith.constant 0 : i32
    %c0_i32_0 = arith.constant 0 : i32
    %c0_i32_1 = arith.constant 0 : i32
    return %arg0, %c0_i32, %c0_i32_0 : i32, i32, i32
  }
  func.func @transform_3(%arg0: i32) -> (i32, i32) {
    %c0_i32 = arith.constant 0 : i32
    %c0_i32_0 = arith.constant 0 : i32
    %c0_i32_1 = arith.constant 0 : i32
    return %c0_i32, %c0_i32_0 : i32, i32
  }
  func.func @transform_4(%arg0: i32) -> (i32, i32) {
    %c0_i32 = arith.constant 0 : i32
    %c0_i32_0 = arith.constant 0 : i32
    return %arg0, %c0_i32 : i32, i32
  }
}

</mosaic_0001>

<llo_original>
// kernel: tpu_custom_call.1
$region0: #{tpu_custom_call.1}
  #allocation0 [shape = 'u32[]', space=smem, size = 0x4, offset = 0x4, fixed_abs, tag = 'smem constant byte address 0x4 - core index']
  #allocation1 [shape = 'u32[72,128]{1,0:T(1,128)}', space=vmem, size = 0x9000, scoped, tag = 'internal scratch']
  %s0 = inlined_call_operand.vmem [shape: f32[2,16,8], index: 0, kind: input, shape index: {}]
  %s1 = inlined_call_operand.vmem [shape: f32[2,8], index: 1, kind: input, shape index: {}]
  %s2 = inlined_call_operand.vmem [shape: f32[2,8,16], index: 2, kind: input, shape index: {}]
  %s3 = inlined_call_operand.vmem [shape: f32[2,8], index: 3, kind: input, shape index: {}]
  %s4 = inlined_call_operand.hbm [shape: f32[8,128], index: 4, kind: output, shape index: {}]
  %s5 = sld [smem:[#allocation0]]
  $region34: #{tpu_custom_call.1} parent=0
    _
  %s7 = ssub.s32 1, %s5
  %s8 = scalar_select 0, %s7, %s5
  $region1: #{tpu_custom_call.1} parent=0
    #allocation2 [shape = 'u8[4096]{0}', space=vmem, size = 0x1000, scoped, tag = 'output window, operand 0, single buffered']
    #allocation3 [shape = 's32[1]{0}', space=sflag, size = 0x4, scoped, tag = 'scoped memory for tpu_custom_call.1']
    %9 = vsyncpa [#allocation3], 0
    // Predicated region
    $region2: #{tpu_custom_call.1} parent=1 // pred_check
      _
    $region3: #{tpu_custom_call.1} parent=1 // pred_check_branch
      %11 = sbr.rel (0) target = $region5
    $region4: #{tpu_custom_call.1} parent=1 // pred_region
      _
    $region5: #{tpu_custom_call.1} parent=1 // pred_fallthru
      _
    // Predicated region
    $region6: #{tpu_custom_call.1} parent=1 // pred_check
      _
    $region7: #{tpu_custom_call.1} parent=1 // pred_check_branch
      %13 = sbr.rel (0) target = $region9
    $region8: #{tpu_custom_call.1} parent=1 // pred_region
      _
    $region9: #{tpu_custom_call.1} parent=1 // pred_fallthru
      _
    // Predicated region
    $region10: #{tpu_custom_call.1} parent=1 // pred_check
      _
    $region11: #{tpu_custom_call.1} parent=1 // pred_check_branch
      %15 = sbr.rel (0) target = $region13
    $region12: #{tpu_custom_call.1} parent=1 // pred_region
      _
    $region13: #{tpu_custom_call.1} parent=1 // pred_fallthru
      _
    // Predicated region
    $region14: #{tpu_custom_call.1} parent=1 // pred_check
      _
    $region15: #{tpu_custom_call.1} parent=1 // pred_check_branch
      %17 = sbr.rel (0) target = $region17
    $region16: #{tpu_custom_call.1} parent=1 // pred_region
      _
    $region17: #{tpu_custom_call.1} parent=1 // pred_fallthru
      _
    %v18 = vld [vmem:[%s0] sm:$0xff]
    %v19 = vld [vmem:[%s0 + $0x8] sm:$0xff]
    %v20 = vld [vmem:[%s0 + $0x10] sm:$0xff]
    %v21 = vld [vmem:[%s0 + $0x18] sm:$0xff]
    %v22 = vlog2.pop %v18
    %v23 = vmul.f32 %v22, 0.6931472
    %v24 = vlog2.pop %v19
    %v25 = vmul.f32 %v24, 0.6931472
    %v26 = vlog2.pop %v20
    %v27 = vmul.f32 %v26, 0.6931472
    %v28 = vlog2.pop %v21
    %v29 = vmul.f32 %v28, 0.6931472
    %vm30 = vcmask 64512
    %v31 = vsel %vm30, %v23, 0.0
    %32 = vadd.xlane.f32.xlu0 %v31
    %v33 = vpop.xlane.xlu0 %32
    %v34 = vsel %vm30, %v25, 0.0
    %35 = vadd.xlane.f32.xlu0 %v34
    %v36 = vpop.xlane.xlu0 %35
    %v37 = vsel %vm30, %v27, 0.0
    %38 = vadd.xlane.f32.xlu0 %v37
    %v39 = vpop.xlane.xlu0 %38
    %v40 = vsel %vm30, %v29, 0.0
    %41 = vadd.xlane.f32.xlu0 %v40
    %v42 = vpop.xlane.xlu0 %41
    %v43 = vld [vmem:[%s2] sm:$0xff]
    %v44 = vld [vmem:[%s2 + $0x8] sm:$0xff]
    %vm45 = vcmask 130048
    %v46 = vsel %vm45, %v43, 0.0
    %v47 = vrot.slane %v46, 4
    %v48 = vadd.f32 %v46, %v47
    %v49 = vrot.slane %v48, 2
    %v50 = vadd.f32 %v48, %v49
    %v51 = vrot.slane %v50, 1
    %v52 = vadd.f32 %v50, %v51
    %v53 = vsel %vm45, %v44, 0.0
    %v54 = vrot.slane %v53, 4
    %v55 = vadd.f32 %v53, %v54
    %v56 = vrot.slane %v55, 2
    %v57 = vadd.f32 %v55, %v56
    %v58 = vrot.slane %v57, 1
    %v59 = vadd.f32 %v57, %v58
    %v64 = vlaneseq
    %v65 = vand.u32 %v64, 127
    %v66 = vperm.slane %v33, %v65
    %v67 = vadd.s32 %v65, 4294967288
    %v68 = vperm.slane %v36, %v67
    %vm69 = vcmask 130112
    %v70 = vsel %vm69, %v68, %v66
    %v71 = vperm.slane %v39, %v65
    %v72 = vperm.slane %v42, %v67
    %v73 = vsel %vm69, %v72, %v71
    %v76 = vmul.f32 %v52, %v70
    %v77 = vmul.f32 %v59, %v73
    %v80 = vrot.slane %v77, 7
    %vm81 = vcmask 1041409
    %v82 = vsel %vm81, %v80, %v76
    %vm84 = vcmask 123904
    %v85 = vsel %vm84, %v82, 0.0
    %86 = vadd.xlane.f32.xlu0 %v85
    %v87 = vpop.xlane.xlu0 %86
    %v88 = vrot.slane %v87, 4
    %v89 = vadd.f32 %v87, %v88
    %v90 = vrot.slane %v89, 2
    %v91 = vadd.f32 %v89, %v90
    %v92 = vrot.slane %v91, 1
    %v93 = vadd.f32 %v91, %v92
    %s94 = vtos %v93
    %v95 = vlaneseq
    %v96 = vshrl.u32 %v95, 7
    %vm97 = vcmp.eq.s32.totalorder %v96, 0
    %vm98 = vcmp.eq.s32.totalorder %v65, 0
    %vm99 = vmand %vm97, %vm98
    %p100 = scmp.eq.s32.totalorder 0, 0
    // Predicated region
    $region18: #{tpu_custom_call.1} parent=1 // pred_check
      %p101 = pneg %p100
    $region19: #{tpu_custom_call.1} parent=1 // pred_check_branch
      %103 = sbr.rel (%p101) target = $region21
    $region20: #{tpu_custom_call.1} parent=1 // pred_region
      %v104 = vld [vmem:[%s1] sm:$0x3]
      %v105 = vld [vmem:[%s3] sm:$0x3]
      %v106 = vsub.f32 %v104, %v105
      %v107 = vmul.f32 %v106, %v106
      %vm108 = vcmask 58368
      %v109 = vsel %vm108, %v107, 0.0
      %110 = vadd.xlane.f32.xlu0 %v109
      %v111 = vpop.xlane.xlu0 %110
      %v112 = vrot.slane %v111, 4
      %v113 = vadd.f32 %v111, %v112
      %v114 = vrot.slane %v113, 2
      %v115 = vadd.f32 %v113, %v114
      %v116 = vrot.slane %v115, 1
      %v117 = vadd.f32 %v115, %v116
      %s118 = vtos %v117
      %s119 = ssub.f32 %s118, %s94
      %v120 = vstv %s119
      %v121 = vsel %vm99, %v120, 0.0
      %122 = vst [vmem:[#allocation2] sm:$0xff] %v121
    $region21: #{tpu_custom_call.1} parent=1 // pred_fallthru
      _
    %p123 = scmp.ne.s32.totalorder 0, 0
    // Predicated region
    $region22: #{tpu_custom_call.1} parent=1 // pred_check
      %p124 = pneg %p123
    $region23: #{tpu_custom_call.1} parent=1 // pred_check_branch
      %126 = sbr.rel (%p124) target = $region25
    $region24: #{tpu_custom_call.1} parent=1 // pred_region
      %s127 = ssub.f32 0.0, %s94
      %v128 = vstv %s127
      %v129 = vsel %vm99, %v128, 0.0
      %130 = vst [vmem:[#allocation2] sm:$0xff] %v129
    $region25: #{tpu_custom_call.1} parent=1 // pred_fallthru
      _
    // Predicated region
    $region26: #{tpu_custom_call.1} parent=1 // pred_check
      _
    $region27: #{tpu_custom_call.1} parent=1 // pred_check_branch
      %132 = sbr.rel (0) target = $region29
    $region28: #{tpu_custom_call.1} parent=1 // pred_region
      %134 = vsyncadd [#allocation3], 0
      %s136 = sshll.u32 [#allocation2], 4
      %s137 = int_to_ptr.vmem [resolvable:$true] %s136
      %s138 = sshll.u32 %s4, 4
      %s139 = int_to_ptr.hbm [resolvable:$true] %s138
      %141 = dma.vmem_to_hbm [thread:$0]  %s137, 128, %s139, [#allocation3]
    $region29: #{tpu_custom_call.1} parent=1 // pred_fallthru
      _
    // Predicated region
    $region30: #{tpu_custom_call.1} parent=1 // pred_check
      _
    $region31: #{tpu_custom_call.1} parent=1 // pred_check_branch
      %143 = sbr.rel (0) target = $region33
    $region32: #{tpu_custom_call.1} parent=1 // pred_region
      %145 = dma.done [#allocation3], 128
    $region33: #{tpu_custom_call.1} parent=1 // pred_fallthru
      _
    %146 = vsyncpa [#allocation3], 1

</llo_original>
